<compile_context>
chip_gen: v6e
topology: v6e:2x2x1
jax: 0.10.0
libtpu: 0.0.40
codegen_flags: <defaults>
</compile_context>

<pallas_src>
import functools

import jax
import jax.numpy as jnp
from jax.experimental import pallas as pl
from jax.experimental.pallas import tpu as pltpu


def _round_up(x, m):
    return ((x + m - 1) // m) * m


def _cdiv(a, b):
    return (a + b - 1) // b


# Tile caps chosen so double-buffered inputs + accumulator stay well inside the
# 32 MiB scoped VMEM default on all of v5e / v6e / v7x.
_TM_MAX = 512            # batch tile
_TK_MAX = 1024           # reduction tile (K-tiled path only)
_TN_MAX = 512            # class tile
_F_RESIDENT_MAX = 2048   # padded F <= this -> single K step, no accumulator scratch
_VMEM_LIMIT = 32 * 1024 * 1024
_SMALL_FLOPS = 1 << 19   # below ~0.5 MFLOP the pallas_call fixed cost dominates


# ----------------------------------------------------------------------------
# Static tiling derivation (pure Python on static shapes).
# ----------------------------------------------------------------------------
def _derive_batch_tiling(batch):
    b_aligned = _round_up(batch, 8)
    n_bt = _cdiv(b_aligned, _TM_MAX)
    if b_aligned >= 16:
        n_bt = max(n_bt, 2)   # v7x: >=2 batch tiles so both TensorCores get work
    tm = _round_up(_cdiv(b_aligned, n_bt), 8)
    return n_bt, tm, n_bt * tm


def _derive_feature_tiling(in_features):
    f_aligned = _round_up(in_features, 128)
    if f_aligned <= _F_RESIDENT_MAX:
        return 1, f_aligned, f_aligned
    n_kt = _cdiv(f_aligned, _TK_MAX)
    tk = _round_up(_cdiv(f_aligned, n_kt), 128)
    return n_kt, tk, n_kt * tk


def _derive_class_tiling(num_classes):
    # Lane-dense output (multiple of 128).  TODO(synk): on v6e/v7x a 256-wide
    # minimum would fill the full 256x256 MXU when the kernel is MXU-bound.
    c_aligned = max(128, _round_up(num_classes, 128))
    n_nt = _cdiv(c_aligned, _TN_MAX)
    tn = _round_up(_cdiv(c_aligned, n_nt), 128)
    return n_nt, tn, n_nt * tn


# ----------------------------------------------------------------------------
# Kernels.
# ----------------------------------------------------------------------------
def _logreg_kernel_fused(x_ref, wt_ref, b_ref, o_ref):
    # Single K step: no scratch, no pl.when -- write the result directly.
    acc = jnp.dot(x_ref[...], wt_ref[...], preferred_element_type=jnp.float32)
    o_ref[...] = (acc + b_ref[...].astype(jnp.float32)).astype(o_ref.dtype)


def _logreg_kernel_acc(x_ref, wt_ref, b_ref, o_ref, acc_ref):
    # K-tiled path: f32 accumulator, init/finalize via pl.when.
    k = pl.program_id(2)

    @pl.when(k == 0)
    def _():
        acc_ref[...] = jnp.zeros_like(acc_ref)

    acc_ref[...] += jnp.dot(x_ref[...], wt_ref[...],
                            preferred_element_type=jnp.float32)

    @pl.when(k == pl.num_programs(2) - 1)
    def _():
        o_ref[...] = (acc_ref[...] + b_ref[...].astype(jnp.float32)).astype(o_ref.dtype)


# ----------------------------------------------------------------------------
# Parameter preparation (call ONCE at model setup, not per forward).
# ----------------------------------------------------------------------------
def prepare_logreg_params(weight, bias, compute_dtype=None):
    """Pad + pre-transpose the classifier parameters once.

    weight: [num_classes, in_features] (PyTorch Linear layout)
    bias:   [num_classes]
    compute_dtype: optional (e.g. jnp.bfloat16) for the matmul operands.
    """
    num_classes, in_features = weight.shape
    _, _, f_pad = _derive_feature_tiling(in_features)
    _, _, c_pad = _derive_class_tiling(num_classes)
    w_dtype = weight.dtype if compute_dtype is None else compute_dtype
    wt_p = (jnp.zeros((f_pad, c_pad), w_dtype)
            .at[:in_features, :num_classes].set(weight.T.astype(w_dtype)))
    bias_p = (jnp.zeros((1, c_pad), jnp.float32)
              .at[0, :num_classes].set(bias.astype(jnp.float32)))
    return {
        "wt_p": wt_p,
        "bias_p": bias_p,
        "in_features": int(in_features),
        "num_classes": int(num_classes),
    }


# ----------------------------------------------------------------------------
# Pallas forward.
# ----------------------------------------------------------------------------
@functools.partial(jax.jit, static_argnames=("num_classes",))
def _logreg_pallas(x, wt_p, bias_p, *, num_classes):
    batch, in_features = x.shape
    f_pad_w, c_pad_w = wt_p.shape
    out_dtype = x.dtype

    n_bt, tm, b_pad = _derive_batch_tiling(batch)
    n_kt, tk, f_pad = _derive_feature_tiling(in_features)
    n_nt, tn, c_pad = _derive_class_tiling(num_classes)
    assert f_pad == f_pad_w and c_pad == c_pad_w, "params prepared for other shape"

    # Cast x only if a reduced-precision compute dtype was requested.
    x_c = x if x.dtype == wt_p.dtype else x.astype(wt_p.dtype)

    # Pad x only when the shape is actually unaligned (early-out otherwise:
    # no extra HBM round-trip on the dominant activation stream).
    if b_pad != batch or f_pad != in_features:
        x_in = (jnp.zeros((b_pad, f_pad), x_c.dtype)
                .at[:batch, :in_features].set(x_c))
    else:
        x_in = x_c

    if n_kt == 1:
        out_p = pl.pallas_call(
            _logreg_kernel_fused,
            out_shape=jax.ShapeDtypeStruct((b_pad, c_pad), out_dtype),
            grid_spec=pltpu.PrefetchScalarGridSpec(
                num_scalar_prefetch=0,
                grid=(n_bt, n_nt),
                in_specs=[
                    pl.BlockSpec((tm, f_pad), lambda i, j: (i, 0)),   # x tile
                    pl.BlockSpec((f_pad, tn), lambda i, j: (0, j)),   # weight^T tile
                    pl.BlockSpec((1, tn), lambda i, j: (0, j)),       # bias tile
                ],
                out_specs=pl.BlockSpec((tm, tn), lambda i, j: (i, j)),
            ),
            compiler_params=pltpu.CompilerParams(
                dimension_semantics=("parallel", "parallel"),
                vmem_limit_bytes=_VMEM_LIMIT,
            ),
        )(x_in, wt_p, bias_p)
    else:
        out_p = pl.pallas_call(
            _logreg_kernel_acc,
            out_shape=jax.ShapeDtypeStruct((b_pad, c_pad), out_dtype),
            grid_spec=pltpu.PrefetchScalarGridSpec(
                num_scalar_prefetch=0,
                grid=(n_bt, n_nt, n_kt),
                in_specs=[
                    pl.BlockSpec((tm, tk), lambda i, j, k: (i, k)),   # x tile
                    pl.BlockSpec((tk, tn), lambda i, j, k: (k, j)),   # weight^T tile
                    pl.BlockSpec((1, tn), lambda i, j, k: (0, j)),    # bias tile
                ],
                out_specs=pl.BlockSpec((tm, tn), lambda i, j, k: (i, j)),
                scratch_shapes=[pltpu.VMEM((tm, tn), jnp.float32)],
            ),
            compiler_params=pltpu.CompilerParams(
                dimension_semantics=("parallel", "parallel", "arbitrary"),
                vmem_limit_bytes=_VMEM_LIMIT,
            ),
        )(x_in, wt_p, bias_p)

    if b_pad != batch or c_pad != num_classes:
        return out_p[:batch, :num_classes]
    return out_p


def logreg_forward(x, b, params, *, emb_table=None, force_pallas=False):
    """Equivalent of LogReg.forward(x, b).

    x:          [batch, in_features]
    b:          [batch] int32 client ids (unused: the reference discards the
                client_bias embedding result)
    params:     output of prepare_logreg_params (hoisted weight/bias prep)
    emb_table:  client_bias.weight, accepted for interface parity, unused.
    returns:    [batch, num_classes]
    """
    # The client_bias embedding lookup in the reference forward is dead code
    # (its result is discarded), so we skip it entirely.
    # TODO(synk): if the embedding result is ever returned/used, add a gather.
    del b, emb_table

    num_classes = params["num_classes"]
    batch, in_features = x.shape
    flops = 2 * batch * in_features * num_classes
    if not force_pallas and flops < _SMALL_FLOPS:
        # Small-shape fast path: pallas_call fixed cost dwarfs the matmul.
        wt = params["wt_p"][:in_features, :num_classes]
        return (x.astype(wt.dtype) @ wt
                + params["bias_p"][0, :num_classes]).astype(x.dtype)

    return _logreg_pallas(x, params["wt_p"], params["bias_p"],
                          num_classes=num_classes)


if __name__ == "__main__":
    # Small shapes consistent with the module.
    batch = 8
    in_features = 32
    K = 4
    num_classes = 10

    key = jax.random.PRNGKey(0)
    k_x, k_b, k_emb, k_w, k_bias = jax.random.split(key, 5)

    x = jax.random.normal(k_x, (batch, in_features), dtype=jnp.float32)
    b = jax.random.randint(k_b, (batch,), 0, K, dtype=jnp.int32)

    # Deterministic parameter init (shapes from __init__).
    emb_table = jax.random.normal(k_emb, (K, in_features), dtype=jnp.float32)
    bound = 1.0 / jnp.sqrt(float(in_features))
    weight = jax.random.uniform(k_w, (num_classes, in_features),
                                minval=-bound, maxval=bound, dtype=jnp.float32)
    bias = jax.random.uniform(k_bias, (num_classes,),
                              minval=-bound, maxval=bound, dtype=jnp.float32)

    # Parameter prep happens ONCE (hoisted out of the forward path).
    params = prepare_logreg_params(weight, bias)

    # force_pallas=True so the demo exercises the Pallas kernel even though
    # these shapes would normally take the small-shape XLA fast path.
    out = logreg_forward(x, b, params, emb_table=emb_table, force_pallas=True)
    out = jax.block_until_ready(out)

    # Cross-check against plain JAX reference.
    ref = x @ weight.T + bias
    assert out.shape == (batch, num_classes)
    assert jnp.allclose(out, ref, atol=1e-5, rtol=1e-5)

    print("KERNEL_OK")
</pallas_src>

<mosaic_0001>
module attributes {stable_mosaic.version = 11 : i64} {
  func.func @_logreg_kernel_fused(%arg0: i32, %arg1: i32, %arg2: memref<8x128xf32, #tpu.memory_space<vmem>>, %arg3: memref<128x128xf32, #tpu.memory_space<vmem>>, %arg4: memref<1x128xf32, #tpu.memory_space<vmem>>, %arg5: memref<8x128xf32, #tpu.memory_space<vmem>>) attributes {dimension_semantics = [#tpu.dimension_semantics<parallel>, #tpu.dimension_semantics<parallel>], iteration_bounds = array<i64: 1, 1>, scalar_prefetch = 0 : i64, scratch_operands = 0 : i64, tpu.core_type = #tpu.core_type<tc>, window_params = [{transform_indices = @transform_0, window_bounds = array<i64: 8, 128>}, {transform_indices = @transform_1, window_bounds = array<i64: 128, 128>}, {transform_indices = @transform_2, window_bounds = array<i64: 1, 128>}, {transform_indices = @transform_3, window_bounds = array<i64: 8, 128>}]} {
    %c0 = arith.constant 0 : index
    %c0_0 = arith.constant 0 : index
    %0 = vector.load %arg2[%c0, %c0_0] : memref<8x128xf32, #tpu.memory_space<vmem>>, vector<8x128xf32>
    %c0_1 = arith.constant 0 : index
    %c0_2 = arith.constant 0 : index
    %1 = vector.load %arg3[%c0_1, %c0_2] : memref<128x128xf32, #tpu.memory_space<vmem>>, vector<128x128xf32>
    %cst = arith.constant dense<0.000000e+00> : vector<8x128xf32>
    %2 = tpu.matmul %0, %1, %cst {dimension_numbers = #tpu.dot_dimension_numbers<[1], [0], [0], [1], [0, 0, 1, 1], [], []>} : vector<8x128xf32>, vector<128x128xf32>, vector<8x128xf32> -> vector<8x128xf32>
    %c0_3 = arith.constant 0 : index
    %c0_4 = arith.constant 0 : index
    %3 = vector.load %arg4[%c0_3, %c0_4] : memref<1x128xf32, #tpu.memory_space<vmem>>, vector<1x128xf32>
    %4 = vector.broadcast %3 : vector<1x128xf32> to vector<8x128xf32>
    %5 = arith.addf %2, %4 : vector<8x128xf32>
    %c0_5 = arith.constant 0 : index
    %c0_6 = arith.constant 0 : index
    %6 = vector.load %arg5[%c0_5, %c0_6] : memref<8x128xf32, #tpu.memory_space<vmem>>, vector<8x128xf32>
    tpu.vector_store %arg5[%c0_5, %c0_6], %5 {strides = array<i32>} : memref<8x128xf32, #tpu.memory_space<vmem>>, vector<8x128xf32>,
    return
  }
  func.func @transform_0(%arg0: i32, %arg1: i32) -> (i32, i32) {
    %c0_i32 = arith.constant 0 : i32
    %c0_i32_0 = arith.constant 0 : i32
    return %arg0, %c0_i32 : i32, i32
  }
  func.func @transform_1(%arg0: i32, %arg1: i32) -> (i32, i32) {
    %c0_i32 = arith.constant 0 : i32
    %c0_i32_0 = arith.constant 0 : i32
    return %c0_i32, %arg1 : i32, i32
  }
  func.func @transform_2(%arg0: i32, %arg1: i32) -> (i32, i32) {
    %c0_i32 = arith.constant 0 : i32
    %c0_i32_0 = arith.constant 0 : i32
    return %c0_i32, %arg1 : i32, i32
  }
  func.func @transform_3(%arg0: i32, %arg1: i32) -> (i32, i32) {
    %c0_i32 = arith.constant 0 : i32
    return %arg0, %arg1 : i32, i32
  }
}

</mosaic_0001>

<llo_original>
// kernel: _logreg_pallas.1
$region0: #{_logreg_pallas.1}
  #allocation0 [shape = 'u32[]', space=smem, size = 0x4, offset = 0x4, fixed_abs, tag = 'smem constant byte address 0x4 - core index']
  #allocation1 [shape = 'u32[144,128]{1,0:T(1,128)}', space=vmem, size = 0x12000, scoped, tag = 'internal scratch']
  %s0 = inlined_call_operand.vmem [shape: f32[8,128], index: 0, kind: input, shape index: {}]
  %s1 = inlined_call_operand.hbm [shape: f32[128,128], index: 1, kind: input, shape index: {}]
  %s2 = inlined_call_operand.vmem [shape: f32[1,128], index: 2, kind: input, shape index: {}]
  %s3 = inlined_call_operand.hbm [shape: f32[8,128], index: 3, kind: output, shape index: {}]
  %s4 = sld [smem:[#allocation0]]
  $region26: #{_logreg_pallas.1} parent=0
    _
  %s6 = ssub.s32 1, %s4
  %s7 = scalar_select 0, %s6, %s4
  $region1: #{_logreg_pallas.1} parent=0
    #allocation2 [shape = 'u8[65536]{0}', space=vmem, size = 0x10000, scoped, tag = 'input window, operand 1, single buffered']
    #allocation3 [shape = 's32[1]{0}', space=sflag, size = 0x4, scoped, tag = 'scoped memory for _logreg_pallas.1']
    #allocation4 [shape = 's32[1]{0}', space=sflag, size = 0x4, scoped, tag = 'scoped memory for _logreg_pallas.1']
    #allocation5 [shape = 'u8[4096]{0}', space=vmem, size = 0x1000, scoped, tag = 'output window, operand 0, single buffered']
    %8 = vsyncpa [#allocation3], 0
    %9 = vsyncpa [#allocation4], 0
    // Predicated region
    $region2: #{_logreg_pallas.1} parent=1 // pred_check
      _
    $region3: #{_logreg_pallas.1} parent=1 // pred_check_branch
      %11 = sbr.rel (0) target = $region5
    $region4: #{_logreg_pallas.1} parent=1 // pred_region
      _
    $region5: #{_logreg_pallas.1} parent=1 // pred_fallthru
      _
    // Predicated region
    $region6: #{_logreg_pallas.1} parent=1 // pred_check
      _
    $region7: #{_logreg_pallas.1} parent=1 // pred_check_branch
      %13 = sbr.rel (0) target = $region9
    $region8: #{_logreg_pallas.1} parent=1 // pred_region
      %s15 = ssub.s32 2048, 2048
      %16 = vsyncadd [#allocation3], %s15
      %s17 = sshll.u32 [#allocation2], 4
      %s18 = int_to_ptr.vmem [resolvable:$true] %s17
      %23 = dma.hbm_to_vmem [thread:$0]  %s1, 2048, %s18, [#allocation3], 128, 128, 8
    $region9: #{_logreg_pallas.1} parent=1 // pred_fallthru
      _
    // Predicated region
    $region10: #{_logreg_pallas.1} parent=1 // pred_check
      _
    $region11: #{_logreg_pallas.1} parent=1 // pred_check_branch
      %25 = sbr.rel (0) target = $region13
    $region12: #{_logreg_pallas.1} parent=1 // pred_region
      _
    $region13: #{_logreg_pallas.1} parent=1 // pred_fallthru
      _
    // Predicated region
    $region14: #{_logreg_pallas.1} parent=1 // pred_check
      _
    $region15: #{_logreg_pallas.1} parent=1 // pred_check_branch
      %27 = sbr.rel (0) target = $region17
    $region16: #{_logreg_pallas.1} parent=1 // pred_region
      %28 = dma.done [#allocation3], 2048
    $region17: #{_logreg_pallas.1} parent=1 // pred_fallthru
      _
    %v29 = vld [vmem:[%s0] sm:$0xff]
    %v30 = vld [vmem:[#allocation2] sm:$0xff]
    %v31 = vld [vmem:[#allocation2 + $0x8] sm:$0xff]
    %v32 = vld [vmem:[#allocation2 + $0x10] sm:$0xff]
    %v33 = vld [vmem:[#allocation2 + $0x18] sm:$0xff]
    %v34 = vld [vmem:[#allocation2 + $0x20] sm:$0xff]
    %v35 = vld [vmem:[#allocation2 + $0x28] sm:$0xff]
    %v36 = vld [vmem:[#allocation2 + $0x30] sm:$0xff]
    %v37 = vld [vmem:[#allocation2 + $0x38] sm:$0xff]
    %v38 = vld [vmem:[#allocation2 + $0x40] sm:$0xff]
    %v39 = vld [vmem:[#allocation2 + $0x48] sm:$0xff]
    %v40 = vld [vmem:[#allocation2 + $0x50] sm:$0xff]
    %v41 = vld [vmem:[#allocation2 + $0x58] sm:$0xff]
    %v42 = vld [vmem:[#allocation2 + $0x60] sm:$0xff]
    %v43 = vld [vmem:[#allocation2 + $0x68] sm:$0xff]
    %v44 = vld [vmem:[#allocation2 + $0x70] sm:$0xff]
    %v45 = vld [vmem:[#allocation2 + $0x78] sm:$0xff]
    %v46 = vld [vmem:[%s2] sm:$0x1]
    %v48 = vlaneseq
    %v49 = vshrl.u32 %v48, 7
    %v50 = vsub.s32 0, %v49
    %v51 = vrot.slane %v46, %v50
    %53 = vmatprep.subr.mxu0 0.0
    %54 = vmatpush1.msra.mxu0 %v45
    %55 = vmatprep.subr.mxu0 0.0
    %56 = vmatpush1.msra.mxu0 %v44
    %57 = vmatprep.subr.mxu0 0.0
    %58 = vmatpush1.msra.mxu0 %v43
    %59 = vmatprep.subr.mxu0 0.0
    %60 = vmatpush1.msra.mxu0 %v42
    %61 = vmatprep.subr.mxu0 0.0
    %62 = vmatpush1.msra.mxu0 %v41
    %63 = vmatprep.subr.mxu0 0.0
    %64 = vmatpush1.msra.mxu0 %v40
    %65 = vmatprep.subr.mxu0 0.0
    %66 = vmatpush1.msra.mxu0 %v39
    %67 = vmatprep.subr.mxu0 0.0
    %68 = vmatpush1.msra.mxu0 %v38
    %69 = vmatprep.subr.mxu0 0.0
    %70 = vmatpush1.msra.mxu0 %v37
    %71 = vmatprep.subr.mxu0 0.0
    %72 = vmatpush1.msra.mxu0 %v36
    %73 = vmatprep.subr.mxu0 0.0
    %74 = vmatpush1.msra.mxu0 %v35
    %75 = vmatprep.subr.mxu0 0.0
    %76 = vmatpush1.msra.mxu0 %v34
    %77 = vmatprep.subr.mxu0 0.0
    %78 = vmatpush1.msra.mxu0 %v33
    %79 = vmatprep.subr.mxu0 0.0
    %80 = vmatpush1.msra.mxu0 %v32
    %81 = vmatprep.subr.mxu0 0.0
    %82 = vmatpush1.msra.mxu0 %v31
    %83 = vmatprep.subr.mxu0 0.0
    %84 = vmatpush1.msra.mxu0 %v30
    %85 = vmatprep.subr.mxu0 0.0
    %86 = vmatpush2.msra.mxu0 0.0
    %87 = vmatprep.subr.mxu0 0.0
    %88 = vmatpush2.msra.mxu0 0.0
    %89 = vmatprep.subr.mxu0 0.0
    %90 = vmatpush2.msra.mxu0 0.0
    %91 = vmatprep.subr.mxu0 0.0
    %92 = vmatpush2.msra.mxu0 0.0
    %93 = vmatprep.subr.mxu0 0.0
    %94 = vmatpush2.msra.mxu0 0.0
    %95 = vmatprep.subr.mxu0 0.0
    %96 = vmatpush2.msra.mxu0 0.0
    %97 = vmatprep.subr.mxu0 0.0
    %98 = vmatpush2.msra.mxu0 0.0
    %99 = vmatprep.subr.mxu0 0.0
    %100 = vmatpush2.msra.mxu0 0.0
    %101 = vmatprep.subr.mxu0 0.0
    %102 = vmatpush2.msra.mxu0 0.0
    %103 = vmatprep.subr.mxu0 0.0
    %104 = vmatpush2.msra.mxu0 0.0
    %105 = vmatprep.subr.mxu0 0.0
    %106 = vmatpush2.msra.mxu0 0.0
    %107 = vmatprep.subr.mxu0 0.0
    %108 = vmatpush2.msra.mxu0 0.0
    %109 = vmatprep.subr.mxu0 0.0
    %110 = vmatpush2.msra.mxu0 0.0
    %111 = vmatprep.subr.mxu0 0.0
    %112 = vmatpush2.msra.mxu0 0.0
    %113 = vmatprep.subr.mxu0 0.0
    %114 = vmatpush2.msra.mxu0 0.0
    %115 = vmatprep.subr.mxu0 0.0
    %116 = vmatpush2.msra.mxu0 0.0
    %117 = vmatprep.mubr.f32.mxu0 0.0
    %118 = vmatmul.mubr.f32.gmra.mxu0 %v29
    %v119 = vpop.f32.mrf.mxu0
    %v120 = vadd.f32 %v51, %v119
    %v121 = vpop.f32.mrf.mxu0
    %122 = vdwg.mxu0
    %123 = vst [vmem:[#allocation5] sm:$0xff] %v120
    // Predicated region
    $region18: #{_logreg_pallas.1} parent=1 // pred_check
      _
    $region19: #{_logreg_pallas.1} parent=1 // pred_check_branch
      %125 = sbr.rel (0) target = $region21
    $region20: #{_logreg_pallas.1} parent=1 // pred_region
      %s127 = ssub.s32 128, 128
      %128 = vsyncadd [#allocation4], %s127
      %s130 = sshll.u32 [#allocation5], 4
      %s131 = int_to_ptr.vmem [resolvable:$true] %s130
      %133 = dma.vmem_to_hbm [thread:$0]  %s131, 128, %s3, [#allocation4]
    $region21: #{_logreg_pallas.1} parent=1 // pred_fallthru
      _
    // Predicated region
    $region22: #{_logreg_pallas.1} parent=1 // pred_check
      _
    $region23: #{_logreg_pallas.1} parent=1 // pred_check_branch
      %135 = sbr.rel (0) target = $region25
    $region24: #{_logreg_pallas.1} parent=1 // pred_region
      %136 = dma.done [#allocation4], 128
    $region25: #{_logreg_pallas.1} parent=1 // pred_fallthru
      _
    %137 = vsyncpa [#allocation3], 1
    %138 = vsyncpa [#allocation4], 1

</llo_original>
